<compile_context>
chip_gen: v5e
topology: v5e:2x2
jax: 0.10.0
libtpu: 0.0.40
codegen_flags: <defaults>
</compile_context>

<pallas_src>
import functools

import jax
import jax.numpy as jnp
from jax import lax
from jax.experimental import pallas as pl
from jax.experimental.pallas import tpu as pltpu


_TILE_N = 512   # q rows per fused-attention grid step (cap for long sequences)
_TILE_M = 512   # rows per output-projection grid step (fits v7x 64 MiB budget)

_DN_AxBT = (((1,), (1,)), ((), ()))   # contract last dims: A @ B^T (native Linear)
_DN_AxB = (((1,), (0,)), ((), ()))    # standard A @ B


# ------------------------------ Pallas kernels -------------------------------

def fused_attn_kernel(x_ref, c_ref, wq_ref, wk_ref, wv_ref, o_ref,
                      k_sc, v_sc, *, heads_per_blk, dim_head, scale):
    """One grid step = one (batch, head-group, q-tile).

    x_ref : (1, TN, C)    query-source tile
    c_ref : (1, M,  C)    key/value source (full context sequence)
    w*_ref: (G*d, C)      q/k/v weight rows for this head group (native (out,in))
    o_ref : (1, TN, G*d)  attention output already in 'b n (h d)' layout
    k_sc  : (M, G*d)      VMEM cache of projected K for this (batch, group)
    v_sc  : (M, G*d)      VMEM cache of projected V for this (batch, group)
    """
    cdt = x_ref.dtype                  # MXU operand dtype (bf16 stays bf16)

    # Project K/V for the whole head group only on the first q-tile of each
    # (batch, group); later q-tiles reuse the VMEM-cached projections.
    @pl.when(pl.program_id(2) == 0)
    def _():
        xc = c_ref[0]                  # (M, C)
        k = lax.dot_general(xc, wk_ref[...], _DN_AxBT,
                            preferred_element_type=jnp.float32)
        v = lax.dot_general(xc, wv_ref[...], _DN_AxBT,
                            preferred_element_type=jnp.float32)
        k_sc[...] = k.astype(cdt)
        v_sc[...] = v.astype(cdt)

    # Project q for this tile (lane-dense matmul against native (out,in) weight).
    xq = x_ref[0]                      # (TN, C)
    q = lax.dot_general(xq, wq_ref[...], _DN_AxBT,
                        preferred_element_type=jnp.float32)
    q = (q * scale).astype(cdt)        # fold softmax scale into q (O(N*d))

    d = dim_head
    outs = []
    for h in range(heads_per_blk):     # static unroll over heads in the group
        sl = slice(h * d, (h + 1) * d)
        k_h = k_sc[:, sl]              # (M, d)
        v_h = v_sc[:, sl]              # (M, d)
        sim = lax.dot_general(q[:, sl], k_h, _DN_AxBT,
                              preferred_element_type=jnp.float32)         # (TN, M)
        m = jnp.max(sim, axis=-1, keepdims=True)
        e = jnp.exp(sim - m)
        den = jnp.sum(e, axis=-1, keepdims=True)
        p = (e * pl.reciprocal(den, approx=True)).astype(cdt)             # EUP recip
        outs.append(lax.dot_general(p, v_h, _DN_AxB,
                                    preferred_element_type=jnp.float32))  # (TN, d)

    # Lane-dense store in 'b n (h d)' layout -> no merge-heads transpose needed.
    o_ref[0] = jnp.concatenate(outs, axis=-1).astype(o_ref.dtype)


def out_proj_kernel(x_ref, w_ref, b_ref, o_ref):
    # x: (TM, H), w: (C, H) native nn.Linear layout, b: (1, C)  ->  o: (TM, C)
    acc = lax.dot_general(x_ref[...], w_ref[...], _DN_AxBT,
                          preferred_element_type=jnp.float32)
    o_ref[...] = (acc + b_ref[...].astype(jnp.float32)).astype(o_ref.dtype)


# ----------------------------- Pallas wrappers --------------------------------

def _pick_head_group(heads, dim_head):
    """Heads per attention grid step.

    Prefer all heads in one step (lane-dense (TN, heads*d) slabs, fewest grid
    steps).  For very wide hidden dims fall back to a divisor whose G*d is a
    multiple of 128 lanes so the blocks stay tileable and VMEM stays bounded.
    """
    if heads * dim_head <= 1024:
        return heads
    for g in range(heads, 0, -1):
        if heads % g == 0 and (g * dim_head) % 128 == 0 and g * dim_head <= 1024:
            return g
    return heads


def _fused_attention(x, ctx, wq, wk, wv, *, heads, dim_head, scale):
    B, N, C = x.shape
    _, M, _ = ctx.shape
    hidden = heads * dim_head
    G = _pick_head_group(heads, dim_head)
    n_groups = heads // G
    gd = G * dim_head
    tn = N if N <= _TILE_N else _TILE_N

    kernel = functools.partial(fused_attn_kernel, heads_per_blk=G,
                               dim_head=dim_head, scale=scale)
    w_spec = pl.BlockSpec((gd, C), lambda b, g, nt: (g, 0))
    return pl.pallas_call(
        kernel,
        out_shape=jax.ShapeDtypeStruct((B, N, hidden), x.dtype),
        grid=(B, n_groups, pl.cdiv(N, tn)),
        in_specs=[
            pl.BlockSpec((1, tn, C), lambda b, g, nt: (b, nt, 0)),   # x tile
            pl.BlockSpec((1, M, C), lambda b, g, nt: (b, 0, 0)),     # full context
            w_spec, w_spec, w_spec,                                  # wq, wk, wv
        ],
        out_specs=pl.BlockSpec((1, tn, gd), lambda b, g, nt: (b, nt, g)),
        scratch_shapes=[
            pltpu.VMEM((M, gd), x.dtype),   # cached projected K for this (b, g)
            pltpu.VMEM((M, gd), x.dtype),   # cached projected V for this (b, g)
        ],
        compiler_params=pltpu.CompilerParams(
            # q-tile axis carries the K/V scratch cache -> "arbitrary";
            # batch & head-group axes shard across megacore.
            dimension_semantics=("parallel", "parallel", "arbitrary")),
    )(x, ctx, wq, wk, wv)


def _out_proj(x2d, weight, bias):
    # x2d: (BN, H); weight: (C, H) native nn.Linear; bias: (C,) -> y = x @ W^T + b
    M, H = x2d.shape
    C = weight.shape[0]
    tm = M if M <= _TILE_M else _TILE_M
    return pl.pallas_call(
        out_proj_kernel,
        out_shape=jax.ShapeDtypeStruct((M, C), x2d.dtype),
        grid=(pl.cdiv(M, tm),),
        in_specs=[
            pl.BlockSpec((tm, H), lambda i: (i, 0)),   # activation tile (pipelined)
            pl.BlockSpec((C, H), lambda i: (0, 0)),    # weight, resident across grid
            pl.BlockSpec((1, C), lambda i: (0, 0)),    # bias, resident across grid
        ],
        out_specs=pl.BlockSpec((tm, C), lambda i: (i, 0)),
        compiler_params=pltpu.CompilerParams(
            dimension_semantics=("parallel",)),
    )(x2d, weight, bias.reshape(1, C))


# --------------------------- Module-level forward -----------------------------

def init_params(key, dim, heads, dim_head, dtype=jnp.float32):
    hidden = heads * dim_head
    k1, k2, k3, k4, k5 = jax.random.split(key, 5)
    s = 0.02   # PyTorch nn.Linear shapes: weight = (out_features, in_features)
    return {
        "wq": jax.random.normal(k1, (hidden, dim), dtype) * s,
        "wk": jax.random.normal(k2, (hidden, dim), dtype) * s,
        "wv": jax.random.normal(k3, (hidden, dim), dtype) * s,
        "wo": jax.random.normal(k4, (dim, hidden), dtype) * s,
        "bo": jax.random.normal(k5, (dim,), dtype) * s,
    }


def cross_frame_attention(x, params, *, heads, dim_head, context=None):
    """x: (B, N, C); context: optional (B, M, C); returns (B, N, C)."""
    B, N, C = x.shape
    ctx = x if context is None else context
    hidden = heads * dim_head
    scale = dim_head ** (-0.5)

    # Fused qkv-projection + attention; output already in 'b n (h d)' layout,
    # so the reshape below is a free contiguous reshape (no transpose).
    attn_out = _fused_attention(x, ctx, params["wq"], params["wk"], params["wv"],
                                heads=heads, dim_head=dim_head, scale=scale)

    # Output projection + bias (row-tiled Pallas kernel). Dropout(0.0) -> identity.
    y = _out_proj(attn_out.reshape(B * N, hidden), params["wo"], params["bo"])
    return y.reshape(B, N, C)


# ----------------------------------- main --------------------------------------

if __name__ == "__main__":
    B, N, C = 2, 16, 32           # batch, tokens, channels
    heads, dim_head = 4, 16       # hidden = 64

    key = jax.random.PRNGKey(0)
    kx, kp = jax.random.split(key)
    x = jax.random.normal(kx, (B, N, C), jnp.float32)
    params = init_params(kp, C, heads, dim_head)

    fwd = jax.jit(functools.partial(cross_frame_attention,
                                    heads=heads, dim_head=dim_head))
    y = fwd(x, params)
    jax.block_until_ready(y)

    # Pure-JAX reference (same math as the PyTorch module).
    def ref(x, p):
        hidden = heads * dim_head
        q = x @ p["wq"].T
        k = x @ p["wk"].T
        v = x @ p["wv"].T
        def sh(t):
            return (t.reshape(B, N, heads, dim_head)
                     .transpose(0, 2, 1, 3).reshape(B * heads, N, dim_head))
        qh, kh, vh = sh(q), sh(k), sh(v)
        sim = jnp.einsum('bid,bjd->bij', qh, kh) * (dim_head ** -0.5)
        attn = jax.nn.softmax(sim, axis=-1)
        o = jnp.einsum('bij,bjd->bid', attn, vh)
        o = (o.reshape(B, heads, N, dim_head).transpose(0, 2, 1, 3)
               .reshape(B, N, hidden))
        return o @ p["wo"].T + p["bo"]

    y_ref = ref(x, params)
    assert y.shape == (B, N, C)
    # Tolerance slightly looser than exact: approx EUP reciprocal in softmax.
    assert jnp.allclose(y, y_ref, atol=2e-3, rtol=2e-3)
    print("KERNEL_OK")
</pallas_src>

<mosaic_0001>
module attributes {stable_mosaic.version = 11 : i64} {
  func.func @fused_attn_kernel(%arg0: i32, %arg1: i32, %arg2: i32, %arg3: memref<1x16x32xf32, #tpu.memory_space<vmem>>, %arg4: memref<1x16x32xf32, #tpu.memory_space<vmem>>, %arg5: memref<64x32xf32, #tpu.memory_space<vmem>>, %arg6: memref<64x32xf32, #tpu.memory_space<vmem>>, %arg7: memref<64x32xf32, #tpu.memory_space<vmem>>, %arg8: memref<1x16x64xf32, #tpu.memory_space<vmem>>, %arg9: memref<16x64xf32, #tpu.memory_space<vmem>>, %arg10: memref<16x64xf32, #tpu.memory_space<vmem>>) attributes {dimension_semantics = [#tpu.dimension_semantics<parallel>, #tpu.dimension_semantics<parallel>, #tpu.dimension_semantics<arbitrary>], iteration_bounds = array<i64: 2, 1, 1>, scalar_prefetch = 0 : i64, scratch_operands = 2 : i64, tpu.core_type = #tpu.core_type<tc>, window_params = [{transform_indices = @transform_0, window_bounds = array<i64: 1, 16, 32>}, {transform_indices = @transform_1, window_bounds = array<i64: 1, 16, 32>}, {transform_indices = @transform_2, window_bounds = array<i64: 64, 32>}, {transform_indices = @transform_3, window_bounds = array<i64: 64, 32>}, {transform_indices = @transform_4, window_bounds = array<i64: 64, 32>}, {transform_indices = @transform_5, window_bounds = array<i64: 1, 16, 64>}]} {
    %c0_i32 = arith.constant 0 : i32
    %0 = arith.cmpi eq, %arg2, %c0_i32 : i32
    %1 = arith.extui %0 : i1 to i32
    %c0_i32_0 = arith.constant 0 : i32
    %2 = arith.cmpi ne, %1, %c0_i32_0 : i32
    scf.if %2 {
      %c0_38 = arith.constant 0 : index
      %c0_39 = arith.constant 0 : index
      %c0_40 = arith.constant 0 : index
      %73 = vector.load %arg4[%c0_38, %c0_39, %c0_40] : memref<1x16x32xf32, #tpu.memory_space<vmem>>, vector<1x16x32xf32>
      %74 = vector.shape_cast %73 : vector<1x16x32xf32> to vector<16x32xf32>
      %c0_41 = arith.constant 0 : index
      %c0_42 = arith.constant 0 : index
      %75 = vector.load %arg6[%c0_41, %c0_42] : memref<64x32xf32, #tpu.memory_space<vmem>>, vector<64x32xf32>
      %cst_43 = arith.constant dense<0.000000e+00> : vector<16x64xf32>
      %76 = tpu.matmul %74, %75, %cst_43 {dimension_numbers = #tpu.dot_dimension_numbers<[1], [1], [0], [0], [0, 0, 1, 0], [], []>} : vector<16x32xf32>, vector<64x32xf32>, vector<16x64xf32> -> vector<16x64xf32>
      %c0_44 = arith.constant 0 : index
      %c0_45 = arith.constant 0 : index
      %77 = vector.load %arg7[%c0_44, %c0_45] : memref<64x32xf32, #tpu.memory_space<vmem>>, vector<64x32xf32>
      %cst_46 = arith.constant dense<0.000000e+00> : vector<16x64xf32>
      %78 = tpu.matmul %74, %77, %cst_46 {dimension_numbers = #tpu.dot_dimension_numbers<[1], [1], [0], [0], [0, 0, 1, 0], [], []>} : vector<16x32xf32>, vector<64x32xf32>, vector<16x64xf32> -> vector<16x64xf32>
      %c0_47 = arith.constant 0 : index
      %c0_48 = arith.constant 0 : index
      %79 = vector.load %arg9[%c0_47, %c0_48] : memref<16x64xf32, #tpu.memory_space<vmem>>, vector<16x64xf32>
      tpu.vector_store %arg9[%c0_47, %c0_48], %76 {strides = array<i32>} : memref<16x64xf32, #tpu.memory_space<vmem>>, vector<16x64xf32>,
      %c0_49 = arith.constant 0 : index
      %c0_50 = arith.constant 0 : index
      %80 = vector.load %arg10[%c0_49, %c0_50] : memref<16x64xf32, #tpu.memory_space<vmem>>, vector<16x64xf32>
      tpu.vector_store %arg10[%c0_49, %c0_50], %78 {strides = array<i32>} : memref<16x64xf32, #tpu.memory_space<vmem>>, vector<16x64xf32>,
    } else {
    }
    %c0 = arith.constant 0 : index
    %c0_1 = arith.constant 0 : index
    %c0_2 = arith.constant 0 : index
    %3 = vector.load %arg3[%c0, %c0_1, %c0_2] : memref<1x16x32xf32, #tpu.memory_space<vmem>>, vector<1x16x32xf32>
    %4 = vector.shape_cast %3 : vector<1x16x32xf32> to vector<16x32xf32>
    %c0_3 = arith.constant 0 : index
    %c0_4 = arith.constant 0 : index
    %5 = vector.load %arg5[%c0_3, %c0_4] : memref<64x32xf32, #tpu.memory_space<vmem>>, vector<64x32xf32>
    %cst = arith.constant dense<0.000000e+00> : vector<16x64xf32>
    %6 = tpu.matmul %4, %5, %cst {dimension_numbers = #tpu.dot_dimension_numbers<[1], [1], [0], [0], [0, 0, 1, 0], [], []>} : vector<16x32xf32>, vector<64x32xf32>, vector<16x64xf32> -> vector<16x64xf32>
    %cst_5 = arith.constant 2.500000e-01 : f32
    %7 = vector.broadcast %cst_5 : f32 to vector<16x64xf32>
    %8 = arith.mulf %6, %7 : vector<16x64xf32>
    %c0_6 = arith.constant 0 : index
    %c0_7 = arith.constant 0 : index
    %9 = vector.load %arg9[%c0_6, %c0_7] : memref<16x64xf32, #tpu.memory_space<vmem>>, vector<16x16xf32>
    %c0_8 = arith.constant 0 : index
    %c0_9 = arith.constant 0 : index
    %10 = vector.load %arg10[%c0_8, %c0_9] : memref<16x64xf32, #tpu.memory_space<vmem>>, vector<16x16xf32>
    %11 = vector.extract_strided_slice %8 {offsets = [0, 0], sizes = [16, 16], strides = [1, 1]} : vector<16x64xf32> to vector<16x16xf32>
    %cst_10 = arith.constant dense<0.000000e+00> : vector<16x16xf32>
    %12 = tpu.matmul %11, %9, %cst_10 {dimension_numbers = #tpu.dot_dimension_numbers<[1], [1], [0], [0], [0, 0, 1, 0], [], []>} : vector<16x16xf32>, vector<16x16xf32>, vector<16x16xf32> -> vector<16x16xf32>
    %cst_11 = arith.constant dense<0xFF800000> : vector<16xf32>
    %13 = vector.multi_reduction <maximumf>, %12, %cst_11 [1] : vector<16x16xf32> to vector<16xf32>
    %14 = vector.shape_cast %13 : vector<16xf32> to vector<16x1xf32>
    %15 = vector.broadcast %14 : vector<16x1xf32> to vector<16x16xf32>
    %16 = arith.subf %12, %15 : vector<16x16xf32>
    %17 = math.exp %16 : vector<16x16xf32>
    %cst_12 = arith.constant dense<0.000000e+00> : vector<16xf32>
    %18 = vector.multi_reduction <add>, %17, %cst_12 [1] : vector<16x16xf32> to vector<16xf32>
    %19 = vector.shape_cast %18 : vector<16xf32> to vector<16x1xf32>
    %20 = tpu.reciprocal %19 {approx = true} : vector<16x1xf32> -> vector<16x1xf32>
    %21 = vector.broadcast %20 : vector<16x1xf32> to vector<16x16xf32>
    %22 = arith.mulf %17, %21 : vector<16x16xf32>
    %cst_13 = arith.constant dense<0.000000e+00> : vector<16x16xf32>
    %23 = tpu.matmul %22, %10, %cst_13 {dimension_numbers = #tpu.dot_dimension_numbers<[1], [0], [0], [1], [0, 0, 1, 1], [], []>} : vector<16x16xf32>, vector<16x16xf32>, vector<16x16xf32> -> vector<16x16xf32>
    %c0_14 = arith.constant 0 : index
    %c16 = arith.constant 16 : index
    %24 = vector.load %arg9[%c0_14, %c16] : memref<16x64xf32, #tpu.memory_space<vmem>>, vector<16x16xf32>
    %c0_15 = arith.constant 0 : index
    %c16_16 = arith.constant 16 : index
    %25 = vector.load %arg10[%c0_15, %c16_16] : memref<16x64xf32, #tpu.memory_space<vmem>>, vector<16x16xf32>
    %26 = vector.extract_strided_slice %8 {offsets = [0, 16], sizes = [16, 16], strides = [1, 1]} : vector<16x64xf32> to vector<16x16xf32>
    %cst_17 = arith.constant dense<0.000000e+00> : vector<16x16xf32>
    %27 = tpu.matmul %26, %24, %cst_17 {dimension_numbers = #tpu.dot_dimension_numbers<[1], [1], [0], [0], [0, 0, 1, 0], [], []>} : vector<16x16xf32>, vector<16x16xf32>, vector<16x16xf32> -> vector<16x16xf32>
    %cst_18 = arith.constant dense<0xFF800000> : vector<16xf32>
    %28 = vector.multi_reduction <maximumf>, %27, %cst_18 [1] : vector<16x16xf32> to vector<16xf32>
    %29 = vector.shape_cast %28 : vector<16xf32> to vector<16x1xf32>
    %30 = vector.broadcast %29 : vector<16x1xf32> to vector<16x16xf32>
    %31 = arith.subf %27, %30 : vector<16x16xf32>
    %32 = math.exp %31 : vector<16x16xf32>
    %cst_19 = arith.constant dense<0.000000e+00> : vector<16xf32>
    %33 = vector.multi_reduction <add>, %32, %cst_19 [1] : vector<16x16xf32> to vector<16xf32>
    %34 = vector.shape_cast %33 : vector<16xf32> to vector<16x1xf32>
    %35 = tpu.reciprocal %34 {approx = true} : vector<16x1xf32> -> vector<16x1xf32>
    %36 = vector.broadcast %35 : vector<16x1xf32> to vector<16x16xf32>
    %37 = arith.mulf %32, %36 : vector<16x16xf32>
    %cst_20 = arith.constant dense<0.000000e+00> : vector<16x16xf32>
    %38 = tpu.matmul %37, %25, %cst_20 {dimension_numbers = #tpu.dot_dimension_numbers<[1], [0], [0], [1], [0, 0, 1, 1], [], []>} : vector<16x16xf32>, vector<16x16xf32>, vector<16x16xf32> -> vector<16x16xf32>
    %c0_21 = arith.constant 0 : index
    %c32 = arith.constant 32 : index
    %39 = vector.load %arg9[%c0_21, %c32] : memref<16x64xf32, #tpu.memory_space<vmem>>, vector<16x16xf32>
    %c0_22 = arith.constant 0 : index
    %c32_23 = arith.constant 32 : index
    %40 = vector.load %arg10[%c0_22, %c32_23] : memref<16x64xf32, #tpu.memory_space<vmem>>, vector<16x16xf32>
    %41 = vector.extract_strided_slice %8 {offsets = [0, 32], sizes = [16, 16], strides = [1, 1]} : vector<16x64xf32> to vector<16x16xf32>
    %cst_24 = arith.constant dense<0.000000e+00> : vector<16x16xf32>
    %42 = tpu.matmul %41, %39, %cst_24 {dimension_numbers = #tpu.dot_dimension_numbers<[1], [1], [0], [0], [0, 0, 1, 0], [], []>} : vector<16x16xf32>, vector<16x16xf32>, vector<16x16xf32> -> vector<16x16xf32>
    %cst_25 = arith.constant dense<0xFF800000> : vector<16xf32>
    %43 = vector.multi_reduction <maximumf>, %42, %cst_25 [1] : vector<16x16xf32> to vector<16xf32>
    %44 = vector.shape_cast %43 : vector<16xf32> to vector<16x1xf32>
    %45 = vector.broadcast %44 : vector<16x1xf32> to vector<16x16xf32>
    %46 = arith.subf %42, %45 : vector<16x16xf32>
    %47 = math.exp %46 : vector<16x16xf32>
    %cst_26 = arith.constant dense<0.000000e+00> : vector<16xf32>
    %48 = vector.multi_reduction <add>, %47, %cst_26 [1] : vector<16x16xf32> to vector<16xf32>
    %49 = vector.shape_cast %48 : vector<16xf32> to vector<16x1xf32>
    %50 = tpu.reciprocal %49 {approx = true} : vector<16x1xf32> -> vector<16x1xf32>
    %51 = vector.broadcast %50 : vector<16x1xf32> to vector<16x16xf32>
    %52 = arith.mulf %47, %51 : vector<16x16xf32>
    %cst_27 = arith.constant dense<0.000000e+00> : vector<16x16xf32>
    %53 = tpu.matmul %52, %40, %cst_27 {dimension_numbers = #tpu.dot_dimension_numbers<[1], [0], [0], [1], [0, 0, 1, 1], [], []>} : vector<16x16xf32>, vector<16x16xf32>, vector<16x16xf32> -> vector<16x16xf32>
    %c0_28 = arith.constant 0 : index
    %c48 = arith.constant 48 : index
    %54 = vector.load %arg9[%c0_28, %c48] : memref<16x64xf32, #tpu.memory_space<vmem>>, vector<16x16xf32>
    %c0_29 = arith.constant 0 : index
    %c48_30 = arith.constant 48 : index
    %55 = vector.load %arg10[%c0_29, %c48_30] : memref<16x64xf32, #tpu.memory_space<vmem>>, vector<16x16xf32>
    %56 = vector.extract_strided_slice %8 {offsets = [0, 48], sizes = [16, 16], strides = [1, 1]} : vector<16x64xf32> to vector<16x16xf32>
    %cst_31 = arith.constant dense<0.000000e+00> : vector<16x16xf32>
    %57 = tpu.matmul %56, %54, %cst_31 {dimension_numbers = #tpu.dot_dimension_numbers<[1], [1], [0], [0], [0, 0, 1, 0], [], []>} : vector<16x16xf32>, vector<16x16xf32>, vector<16x16xf32> -> vector<16x16xf32>
    %cst_32 = arith.constant dense<0xFF800000> : vector<16xf32>
    %58 = vector.multi_reduction <maximumf>, %57, %cst_32 [1] : vector<16x16xf32> to vector<16xf32>
    %59 = vector.shape_cast %58 : vector<16xf32> to vector<16x1xf32>
    %60 = vector.broadcast %59 : vector<16x1xf32> to vector<16x16xf32>
    %61 = arith.subf %57, %60 : vector<16x16xf32>
    %62 = math.exp %61 : vector<16x16xf32>
    %cst_33 = arith.constant dense<0.000000e+00> : vector<16xf32>
    %63 = vector.multi_reduction <add>, %62, %cst_33 [1] : vector<16x16xf32> to vector<16xf32>
    %64 = vector.shape_cast %63 : vector<16xf32> to vector<16x1xf32>
    %65 = tpu.reciprocal %64 {approx = true} : vector<16x1xf32> -> vector<16x1xf32>
    %66 = vector.broadcast %65 : vector<16x1xf32> to vector<16x16xf32>
    %67 = arith.mulf %62, %66 : vector<16x16xf32>
    %cst_34 = arith.constant dense<0.000000e+00> : vector<16x16xf32>
    %68 = tpu.matmul %67, %55, %cst_34 {dimension_numbers = #tpu.dot_dimension_numbers<[1], [0], [0], [1], [0, 0, 1, 1], [], []>} : vector<16x16xf32>, vector<16x16xf32>, vector<16x16xf32> -> vector<16x16xf32>
    %69 = tpu.concatenate %23, %38, %53, %68 in 1 : vector<16x16xf32>, vector<16x16xf32>, vector<16x16xf32>, vector<16x16xf32> -> vector<16x64xf32>
    %c0_35 = arith.constant 0 : index
    %c0_36 = arith.constant 0 : index
    %c0_37 = arith.constant 0 : index
    %70 = vector.load %arg8[%c0_35, %c0_36, %c0_37] : memref<1x16x64xf32, #tpu.memory_space<vmem>>, vector<1x16x64xf32>
    %71 = vector.shape_cast %70 : vector<1x16x64xf32> to vector<16x64xf32>
    %72 = vector.shape_cast %69 : vector<16x64xf32> to vector<1x16x64xf32>
    tpu.vector_store %arg8[%c0_35, %c0_36, %c0_37], %72 {strides = array<i32>} : memref<1x16x64xf32, #tpu.memory_space<vmem>>, vector<1x16x64xf32>,
    return
  }
  func.func @transform_0(%arg0: i32, %arg1: i32, %arg2: i32) -> (i32, i32, i32) {
    %c0_i32 = arith.constant 0 : i32
    %c0_i32_0 = arith.constant 0 : i32
    return %arg0, %arg2, %c0_i32 : i32, i32, i32
  }
  func.func @transform_1(%arg0: i32, %arg1: i32, %arg2: i32) -> (i32, i32, i32) {
    %c0_i32 = arith.constant 0 : i32
    %c0_i32_0 = arith.constant 0 : i32
    %c0_i32_1 = arith.constant 0 : i32
    return %arg0, %c0_i32, %c0_i32_0 : i32, i32, i32
  }
  func.func @transform_2(%arg0: i32, %arg1: i32, %arg2: i32) -> (i32, i32) {
    %c0_i32 = arith.constant 0 : i32
    %c0_i32_0 = arith.constant 0 : i32
    return %arg1, %c0_i32 : i32, i32
  }
  func.func @transform_3(%arg0: i32, %arg1: i32, %arg2: i32) -> (i32, i32) {
    %c0_i32 = arith.constant 0 : i32
    %c0_i32_0 = arith.constant 0 : i32
    return %arg1, %c0_i32 : i32, i32
  }
  func.func @transform_4(%arg0: i32, %arg1: i32, %arg2: i32) -> (i32, i32) {
    %c0_i32 = arith.constant 0 : i32
    %c0_i32_0 = arith.constant 0 : i32
    return %arg1, %c0_i32 : i32, i32
  }
  func.func @transform_5(%arg0: i32, %arg1: i32, %arg2: i32) -> (i32, i32, i32) {
    %c0_i32 = arith.constant 0 : i32
    return %arg0, %arg2, %arg1 : i32, i32, i32
  }
}

module attributes {stable_mosaic.version = 11 : i64} {
  func.func @out_proj_kernel(%arg0: i32, %arg1: memref<32x64xf32, #tpu.memory_space<vmem>>, %arg2: memref<32x64xf32, #tpu.memory_space<vmem>>, %arg3: memref<1x32xf32, #tpu.memory_space<vmem>>, %arg4: memref<32x32xf32, #tpu.memory_space<vmem>>) attributes {dimension_semantics = [#tpu.dimension_semantics<parallel>], iteration_bounds = array<i64: 1>, scalar_prefetch = 0 : i64, scratch_operands = 0 : i64, tpu.core_type = #tpu.core_type<tc>, window_params = [{transform_indices = @transform_0, window_bounds = array<i64: 32, 64>}, {pipeline_mode = #tpu.pipeline_mode<synchronous>, transform_indices = @transform_1, window_bounds = array<i64: 32, 64>}, {pipeline_mode = #tpu.pipeline_mode<synchronous>, transform_indices = @transform_2, window_bounds = array<i64: 1, 32>}, {transform_indices = @transform_3, window_bounds = array<i64: 32, 32>}]} {
    %c0 = arith.constant 0 : index
    %c0_0 = arith.constant 0 : index
    %0 = vector.load %arg1[%c0, %c0_0] : memref<32x64xf32, #tpu.memory_space<vmem>>, vector<32x64xf32>
    %c0_1 = arith.constant 0 : index
    %c0_2 = arith.constant 0 : index
    %1 = vector.load %arg2[%c0_1, %c0_2] : memref<32x64xf32, #tpu.memory_space<vmem>>, vector<32x64xf32>
    %cst = arith.constant dense<0.000000e+00> : vector<32x32xf32>
    %2 = tpu.matmul %0, %1, %cst {dimension_numbers = #tpu.dot_dimension_numbers<[1], [1], [0], [0], [0, 0, 1, 0], [], []>} : vector<32x64xf32>, vector<32x64xf32>, vector<32x32xf32> -> vector<32x32xf32>
    %c0_3 = arith.constant 0 : index
    %c0_4 = arith.constant 0 : index
    %3 = vector.load %arg3[%c0_3, %c0_4] : memref<1x32xf32, #tpu.memory_space<vmem>>, vector<1x32xf32>
    %4 = vector.broadcast %3 : vector<1x32xf32> to vector<32x32xf32>
    %5 = arith.addf %2, %4 : vector<32x32xf32>
    %c0_5 = arith.constant 0 : index
    %c0_6 = arith.constant 0 : index
    %6 = vector.load %arg4[%c0_5, %c0_6] : memref<32x32xf32, #tpu.memory_space<vmem>>, vector<32x32xf32>
    tpu.vector_store %arg4[%c0_5, %c0_6], %5 {strides = array<i32>} : memref<32x32xf32, #tpu.memory_space<vmem>>, vector<32x32xf32>,
    return
  }
  func.func @transform_0(%arg0: i32) -> (i32, i32) {
    %c0_i32 = arith.constant 0 : i32
    %c0_i32_0 = arith.constant 0 : i32
    return %arg0, %c0_i32 : i32, i32
  }
  func.func @transform_1(%arg0: i32) -> (i32, i32) {
    %c0_i32 = arith.constant 0 : i32
    %c0_i32_0 = arith.constant 0 : i32
    %c0_i32_1 = arith.constant 0 : i32
    return %c0_i32, %c0_i32_0 : i32, i32
  }
  func.func @transform_2(%arg0: i32) -> (i32, i32) {
    %c0_i32 = arith.constant 0 : i32
    %c0_i32_0 = arith.constant 0 : i32
    %c0_i32_1 = arith.constant 0 : i32
    return %c0_i32, %c0_i32_0 : i32, i32
  }
  func.func @transform_3(%arg0: i32) -> (i32, i32) {
    %c0_i32 = arith.constant 0 : i32
    %c0_i32_0 = arith.constant 0 : i32
    return %arg0, %c0_i32 : i32, i32
  }
}

</mosaic_0001>

<llo_original>
// kernel: cross_frame_attention.3
$region0: #{cross_frame_attention.3}
  #allocation0 [shape = 'u32[]', space=smem, size = 0x4, offset = 0x4, fixed_abs, tag = 'smem constant byte address 0x4 - core index']
  #allocation1 [shape = 'u32[72,128]{1,0:T(1,128)}', space=vmem, size = 0x9000, scoped, tag = 'internal scratch']
  %s0 = inlined_call_operand.vmem [shape: f32[32,64], index: 0, kind: input, shape index: {}]
  %s1 = inlined_call_operand.vmem [shape: f32[32,64], index: 1, kind: input, shape index: {}]
  %s2 = inlined_call_operand.vmem [shape: f32[1,32], index: 2, kind: input, shape index: {}]
  %s3 = inlined_call_operand.hbm [shape: f32[32,32], index: 3, kind: output, shape index: {}]
  %s4 = sld [smem:[#allocation0]]
  $region22: #{cross_frame_attention.3} parent=0
    _
  %s6 = ssub.s32 1, %s4
  %s7 = scalar_select 0, %s6, %s4
  $region1: #{cross_frame_attention.3} parent=0
    #allocation2 [shape = 'u8[16384]{0}', space=vmem, size = 0x4000, scoped, tag = 'output window, operand 0, single buffered']
    #allocation3 [shape = 's32[1]{0}', space=sflag, size = 0x4, scoped, tag = 'scoped memory for cross_frame_attention.3']
    %8 = vsyncpa [#allocation3], 0
    // Predicated region
    $region2: #{cross_frame_attention.3} parent=1 // pred_check
      _
    $region3: #{cross_frame_attention.3} parent=1 // pred_check_branch
      %10 = sbr.rel (0) target = $region5
    $region4: #{cross_frame_attention.3} parent=1 // pred_region
      _
    $region5: #{cross_frame_attention.3} parent=1 // pred_fallthru
      _
    // Predicated region
    $region6: #{cross_frame_attention.3} parent=1 // pred_check
      _
    $region7: #{cross_frame_attention.3} parent=1 // pred_check_branch
      %12 = sbr.rel (0) target = $region9
    $region8: #{cross_frame_attention.3} parent=1 // pred_region
      _
    $region9: #{cross_frame_attention.3} parent=1 // pred_fallthru
      _
    // Predicated region
    $region10: #{cross_frame_attention.3} parent=1 // pred_check
      _
    $region11: #{cross_frame_attention.3} parent=1 // pred_check_branch
      %14 = sbr.rel (0) target = $region13
    $region12: #{cross_frame_attention.3} parent=1 // pred_region
      _
    $region13: #{cross_frame_attention.3} parent=1 // pred_fallthru
      _
    %v15 = vld [vmem:[%s0] sm:$0xff]
    %v16 = vld [vmem:[%s0 + $0x8] sm:$0xff]
    %v17 = vld [vmem:[%s0 + $0x10] sm:$0xff]
    %v18 = vld [vmem:[%s0 + $0x18] sm:$0xff]
    %v19 = vld [vmem:[%s1] sm:$0xff]
    %v20 = vld [vmem:[%s1 + $0x8] sm:$0xff]
    %v21 = vld [vmem:[%s1 + $0x10] sm:$0xff]
    %v22 = vld [vmem:[%s1 + $0x18] sm:$0xff]
    %v23 = vld [vmem:[%s2] sm:$0x1]
    %v25 = vperm.slane %v23, 0
    %vm27 = vcmask 523264
    %v29 = vsel %vm27, %v15, 0
    %v32 = vsel %vm27, %v16, 0
    %v35 = vsel %vm27, %v17, 0
    %v38 = vsel %vm27, %v18, 0
    %v41 = vsel %vm27, %v19, 0
    %v44 = vsel %vm27, %v20, 0
    %v47 = vsel %vm27, %v21, 0
    %v50 = vsel %vm27, %v22, 0
    %52 = vmatpush.xpose.msra.mxu0 0.0
    %53 = vmatpush.xpose.msra.mxu0 0.0
    %54 = vmatpush.xpose.msra.mxu0 0.0
    %55 = vmatpush.xpose.msra.mxu0 0.0
    %56 = vmatpush.xpose.msra.mxu0 0.0
    %57 = vmatpush.xpose.msra.mxu0 0.0
    %58 = vmatpush.xpose.msra.mxu0 0.0
    %59 = vmatpush.xpose.msra.mxu0 0.0
    %60 = vmatpush.xpose.msra.mxu0 0.0
    %61 = vmatpush.xpose.msra.mxu0 0.0
    %62 = vmatpush.xpose.msra.mxu0 0.0
    %63 = vmatpush.xpose.msra.mxu0 0.0
    %64 = vmatpush.xpose.msra.mxu0 %v50
    %65 = vmatpush.xpose.msra.mxu0 %v47
    %66 = vmatpush.xpose.msra.mxu0 %v44
    %67 = vmatpush.xpose.msra.mxu0 %v41
    %68 = vmatmul.f32.gmra.mxu0 %v29
    %v69 = vpop.f32.mrf.mxu0
    %v70 = vadd.f32 %v25, %v69
    %71 = vmatmul.f32.gmra.mxu0 %v32
    %v72 = vpop.f32.mrf.mxu0
    %v73 = vadd.f32 %v25, %v72
    %74 = vmatmul.f32.gmra.mxu0 %v35
    %v75 = vpop.f32.mrf.mxu0
    %v76 = vadd.f32 %v25, %v75
    %77 = vmatmul.f32.gmra.mxu0 %v38
    %v78 = vpop.f32.mrf.mxu0
    %v79 = vadd.f32 %v25, %v78
    %80 = vdwg.mxu0
    %vm81 = vcmask 261120
    %82 = vst.msk [vmem:[#allocation2] sm:$0xff] %vm81, %v70
    %83 = vst.msk [vmem:[#allocation2 + $0x8] sm:$0xff] %vm81, %v73
    %84 = vst.msk [vmem:[#allocation2 + $0x10] sm:$0xff] %vm81, %v76
    %85 = vst.msk [vmem:[#allocation2 + $0x18] sm:$0xff] %vm81, %v79
    // Predicated region
    $region14: #{cross_frame_attention.3} parent=1 // pred_check
      _
    $region15: #{cross_frame_attention.3} parent=1 // pred_check_branch
      %87 = sbr.rel (0) target = $region17
    $region16: #{cross_frame_attention.3} parent=1 // pred_region
      %89 = vsyncadd [#allocation3], 0
      %s90 = sshll.u32 [#allocation2], 4
      %s91 = int_to_ptr.vmem [resolvable:$true] %s90
      %s92 = sshll.u32 %s3, 4
      %s93 = int_to_ptr.hbm [resolvable:$true] %s92
      %98 = dma.vmem_to_hbm [thread:$0]  %s91, 512, %s93, [#allocation3], 128, 128, 8
    $region17: #{cross_frame_attention.3} parent=1 // pred_fallthru
      _
    // Predicated region
    $region18: #{cross_frame_attention.3} parent=1 // pred_check
      _
    $region19: #{cross_frame_attention.3} parent=1 // pred_check_branch
      %100 = sbr.rel (0) target = $region21
    $region20: #{cross_frame_attention.3} parent=1 // pred_region
      %102 = dma.done [#allocation3], 512
    $region21: #{cross_frame_attention.3} parent=1 // pred_fallthru
      _
    %103 = vsyncpa [#allocation3], 1

// kernel: cross_frame_attention.2
$region0: #{cross_frame_attention.2}
  #allocation0 [shape = 'u32[]', space=smem, size = 0x4, offset = 0x4, fixed_abs, tag = 'smem constant byte address 0x4 - core index']
  #allocation1 [shape = 'u32[72,128]{1,0:T(1,128)}', space=vmem, size = 0x9000, scoped, tag = 'internal scratch']
  #allocation2 [shape = 'f32[16,64]{1,0:T(8,128)}', space=vmem, size = 0x2000, scoped, tag = 'scratch operand']
  #allocation3 [shape = 'f32[16,64]{1,0:T(8,128)}', space=vmem, size = 0x2000, scoped, tag = 'scratch operand']
  %s0 = inlined_call_operand.vmem [shape: f32[2,16,32], index: 0, kind: input, shape index: {}, may-alias: {0,1}]
  %s1 = inlined_call_operand.vmem [shape: f32[2,16,32], index: 1, kind: input, shape index: {}, may-alias: {0,1}]
  %s2 = inlined_call_operand.vmem [shape: f32[64,32], index: 2, kind: input, shape index: {}]
  %s3 = inlined_call_operand.vmem [shape: f32[64,32], index: 3, kind: input, shape index: {}]
  %s4 = inlined_call_operand.vmem [shape: f32[64,32], index: 4, kind: input, shape index: {}]
  %s5 = inlined_call_operand.vmem [shape: f32[2,16,64], index: 5, kind: output, shape index: {}]
  %s6 = sld [smem:[#allocation0]]
  $region57: #{cross_frame_attention.2} parent=0
    _
  %s8 = ssub.s32 1, %s6
  %s9 = scalar_select 0, %s8, %s6
  loop: start=0, step=1, limit=4
  $region2: #{cross_frame_attention.2} parent=0 // loop_pre_header
    _
  $region3: #{cross_frame_attention.2} parent=0 // loop_header
    %s11 = sphi 0, %s15
    %p12 = scmp.ge.s32.totalorder %s11, 4
    %s18 = sphi 0, %s37
    %s19 = sphi 0, %s33
    %s20 = sphi 0, %s29
    %s21 = sphi 0, %s18
    %s22 = sphi 0, %s19
    %s23 = sphi 0, %s20
    %s24 = sphi 0, %s21
    %s25 = sphi 0, %s22
    %s26 = sphi 0, %s23
    %s42 = sphi 0, %s44
    %s45 = sphi 0, %s42
    %s46 = sphi 0, %s45
    %s62 = sphi 0, %s46
    %s68 = sphi 0, %s70
    %s71 = sphi 0, %s68
    %s72 = sphi 0, %s71
    %s88 = sphi 0, %s72
    %s94 = sphi 0, %s96
    %s97 = sphi 0, %s94
    %s98 = sphi 0, %s97
    %s114 = sphi 0, %s98
    %s120 = sphi 0, %s122
    %s123 = sphi 0, %s120
    %s124 = sphi 0, %s123
    %s140 = sphi 0, %s124
    %s146 = sphi 0, %s148
    %s149 = sphi 0, %s146
    %s150 = sphi 0, %s149
    %s166 = sphi 0, %s150
    %s176 = sphi 0, %s178
    %s179 = sphi 0, %s176
    %s180 = sphi 0, %s179
    %s196 = sphi 0, %s180
  $region4: #{cross_frame_attention.2} parent=0 // loop_header_branch
    %14 = sbr.rel (%p12) target = $region8
  $region5: #{cross_frame_attention.2} parent=0 // loop_body
    %s16 = ssub.s32 %s11, 1
    %s17 = ssub.s32 %s11, 2
    %s27 = sadd.s32 1, %s20
    %p28 = scmp.ge.s32.totalorder %s27, 1
    %s29 = scalar_select %p28, 0, %s27
    %s30 = sadd.s32 1, %s19
    %s31 = scalar_select %p28, %s30, %s19
    %p32 = scmp.ge.s32.totalorder %s31, 1
    %s33 = scalar_select %p32, 0, %s31
    %s34 = sadd.s32 1, %s18
    %s35 = scalar_select %p32, %s34, %s18
    %p36 = scmp.ge.s32.totalorder %s35, 2
    %s37 = scalar_select %p36, 0, %s35
    %s38 = ssub.s32 %s18, %s37
    %s39 = ssub.s32 %s20, %s29
    %s40 = sor.u32 %s38, %s39
    %p41 = scmp.eq.s32.totalorder %s40, 0
    %s43 = sadd.s32 %s42, 1
    %s44 = scalar_select %p41, %s42, %s43
    %p47 = pneg %p41
    %p48 = scmp.eq.s32.totalorder %s11, 1
    %p49 = por %p47, %p48
    %p50 = scmp.ne.s32.totalorder %s42, %s45
    %p51 = scmp.eq.s32.totalorder %s11, 0
    %p52 = por %p50, %p51
    %p53 = scmp.ne.s32.totalorder %s42, %s45
    %p54 = scmp.eq.s32.totalorder %s16, 1
    %p55 = por %p53, %p54
    %p56 = scmp.ne.s32.totalorder %s45, %s46
    %p57 = scmp.eq.s32.totalorder %s16, 0
    %p58 = por %p56, %p57
    %p59 = scmp.ne.s32.totalorder %s45, %s46
    %p60 = scmp.eq.s32.totalorder %s17, 1
    %p61 = por %p59, %p60
    %p63 = scmp.ne.s32.totalorder %s46, %s62
    %p64 = scmp.eq.s32.totalorder %s17, 0
    %p65 = por %p63, %p64
    %s66 = ssub.s32 %s18, %s37
    %p67 = scmp.eq.s32.totalorder %s66, 0
    %s69 = sadd.s32 %s68, 1
    %s70 = scalar_select %p67, %s68, %s69
    %p73 = pneg %p67
    %p74 = scmp.eq.s32.totalorder %s11, 1
    %p75 = por %p73, %p74
    %p76 = scmp.ne.s32.totalorder %s68, %s71
    %p77 = scmp.eq.s32.totalorder %s11, 0
    %p78 = por %p76, %p77
    %p79 = scmp.ne.s32.totalorder %s68, %s71
    %p80 = scmp.eq.s32.totalorder %s16, 1
    %p81 = por %p79, %p80
    %p82 = scmp.ne.s32.totalorder %s71, %s72
    %p83 = scmp.eq.s32.totalorder %s16, 0
    %p84 = por %p82, %p83
    %p85 = scmp.ne.s32.totalorder %s71, %s72
    %p86 = scmp.eq.s32.totalorder %s17, 1
    %p87 = por %p85, %p86
    %p89 = scmp.ne.s32.totalorder %s72, %s88
    %p90 = scmp.eq.s32.totalorder %s17, 0
    %p91 = por %p89, %p90
    %s92 = ssub.s32 %s19, %s33
    %p93 = scmp.eq.s32.totalorder %s92, 0
    %s95 = sadd.s32 %s94, 1
    %s96 = scalar_select %p93, %s94, %s95
    %p99 = pneg %p93
    %p100 = scmp.eq.s32.totalorder %s11, 1
    %p101 = por %p99, %p100
    %p102 = scmp.ne.s32.totalorder %s94, %s97
    %p103 = scmp.eq.s32.totalorder %s11, 0
    %p104 = por %p102, %p103
    %p105 = scmp.ne.s32.totalorder %s94, %s97
    %p106 = scmp.eq.s32.totalorder %s16, 1
    %p107 = por %p105, %p106
    %p108 = scmp.ne.s32.totalorder %s97, %s98
    %p109 = scmp.eq.s32.totalorder %s16, 0
    %p110 = por %p108, %p109
    %p111 = scmp.ne.s32.totalorder %s97, %s98
    %p112 = scmp.eq.s32.totalorder %s17, 1
    %p113 = por %p111, %p112
    %p115 = scmp.ne.s32.totalorder %s98, %s114
    %p116 = scmp.eq.s32.totalorder %s17, 0
    %p117 = por %p115, %p116
    %s118 = ssub.s32 %s19, %s33
    %p119 = scmp.eq.s32.totalorder %s118, 0
    %s121 = sadd.s32 %s120, 1
    %s122 = scalar_select %p119, %s120, %s121
    %p125 = pneg %p119
    %p126 = scmp.eq.s32.totalorder %s11, 1
    %p127 = por %p125, %p126
    %p128 = scmp.ne.s32.totalorder %s120, %s123
    %p129 = scmp.eq.s32.totalorder %s11, 0
    %p130 = por %p128, %p129
    %p131 = scmp.ne.s32.totalorder %s120, %s123
    %p132 = scmp.eq.s32.totalorder %s16, 1
    %p133 = por %p131, %p132
    %p134 = scmp.ne.s32.totalorder %s123, %s124
    %p135 = scmp.eq.s32.totalorder %s16, 0
    %p136 = por %p134, %p135
    %p137 = scmp.ne.s32.totalorder %s123, %s124
    %p138 = scmp.eq.s32.totalorder %s17, 1
    %p139 = por %p137, %p138
    %p141 = scmp.ne.s32.totalorder %s124, %s140
    %p142 = scmp.eq.s32.totalorder %s17, 0
    %p143 = por %p141, %p142
    %s144 = ssub.s32 %s19, %s33
    %p145 = scmp.eq.s32.totalorder %s144, 0
    %s147 = sadd.s32 %s146, 1
    %s148 = scalar_select %p145, %s146, %s147
    %p151 = pneg %p145
    %p152 = scmp.eq.s32.totalorder %s11, 1
    %p153 = por %p151, %p152
    %p154 = scmp.ne.s32.totalorder %s146, %s149
    %p155 = scmp.eq.s32.totalorder %s11, 0
    %p156 = por %p154, %p155
    %p157 = scmp.ne.s32.totalorder %s146, %s149
    %p158 = scmp.eq.s32.totalorder %s16, 1
    %p159 = por %p157, %p158
    %p160 = scmp.ne.s32.totalorder %s149, %s150
    %p161 = scmp.eq.s32.totalorder %s16, 0
    %p162 = por %p160, %p161
    %p163 = scmp.ne.s32.totalorder %s149, %s150
    %p164 = scmp.eq.s32.totalorder %s17, 1
    %p165 = por %p163, %p164
    %p167 = scmp.ne.s32.totalorder %s150, %s166
    %p168 = scmp.eq.s32.totalorder %s17, 0
    %p169 = por %p167, %p168
    %s170 = ssub.s32 %s18, %s37
    %s171 = ssub.s32 %s20, %s29
    %s172 = sor.u32 %s170, %s171
    %s173 = ssub.s32 %s19, %s33
    %s174 = sor.u32 %s172, %s173
    %p175 = scmp.eq.s32.totalorder %s174, 0
    %s177 = sadd.s32 %s176, 1
    %s178 = scalar_select %p175, %s176, %s177
    %p181 = pneg %p175
    %p182 = scmp.eq.s32.totalorder %s11, 1
    %p183 = por %p181, %p182
    %p184 = scmp.ne.s32.totalorder %s176, %s179
    %p185 = scmp.eq.s32.totalorder %s11, 0
    %p186 = por %p184, %p185
    %p187 = scmp.ne.s32.totalorder %s176, %s179
    %p188 = scmp.eq.s32.totalorder %s16, 1
    %p189 = por %p187, %p188
    %p190 = scmp.ne.s32.totalorder %s179, %s180
    %p191 = scmp.eq.s32.totalorder %s16, 0
    %p192 = por %p190, %p191
    %p193 = scmp.ne.s32.totalorder %s179, %s180
    %p194 = scmp.eq.s32.totalorder %s17, 1
    %p195 = por %p193, %p194
    %p197 = scmp.ne.s32.totalorder %s180, %s196
    %p198 = scmp.eq.s32.totalorder %s17, 0
    %p199 = por %p197, %p198
    %p200 = scmp.le.s32.totalorder 1, %s11
    %p201 = scmp.lt.s32.totalorder %s11, 3
    %p202 = pnand %p200, %p201
    %p203 = pneg %p202
    // Predicated region
    $region9: #{cross_frame_attention.2} parent=5 // pred_check
      _
    $region10: #{cross_frame_attention.2} parent=5 // pred_check_branch
      %205 = sbr.rel (%p202) target = $region12
    $region11: #{cross_frame_attention.2} parent=5 // pred_region
      %s206 = ssub.s32 %s11, 1
      // Predicated region
      $region13: #{cross_frame_attention.2} parent=11 // pred_check
        %p207 = pneg %p110
      $region14: #{cross_frame_attention.2} parent=11 // pred_check_branch
        %209 = sbr.rel (%p207) target = $region16
      $region15: #{cross_frame_attention.2} parent=11 // pred_region
        %s210 = smul.u32 8, %s22
        %p211 = scmp.lt.s32.totalorder %s210, 7
        %s212 = scalar_select %p211, %s210, 7
        %s213 = smul.addr %s212, 8
        %s214 = scalar_lea.vmem %s2, %s213
        %s215 = smul.u32 8, %s22
      $region16: #{cross_frame_attention.2} parent=11 // pred_fallthru
        _
      // Predicated region
      $region17: #{cross_frame_attention.2} parent=11 // pred_check
        %p216 = pneg %p136
      $region18: #{cross_frame_attention.2} parent=11 // pred_check_branch
        %218 = sbr.rel (%p216) target = $region20
      $region19: #{cross_frame_attention.2} parent=11 // pred_region
        %s219 = smul.u32 8, %s22
        %p220 = scmp.lt.s32.totalorder %s219, 7
        %s221 = scalar_select %p220, %s219, 7
        %s222 = smul.addr %s221, 8
        %s223 = scalar_lea.vmem %s3, %s222
        %s224 = smul.u32 8, %s22
      $region20: #{cross_frame_attention.2} parent=11 // pred_fallthru
        _
      // Predicated region
      $region21: #{cross_frame_attention.2} parent=11 // pred_check
        %p225 = pneg %p162
      $region22: #{cross_frame_attention.2} parent=11 // pred_check_branch
        %227 = sbr.rel (%p225) target = $region24
      $region23: #{cross_frame_attention.2} parent=11 // pred_region
        %s228 = smul.u32 8, %s22
        %p229 = scmp.lt.s32.totalorder %s228, 7
        %s230 = scalar_select %p229, %s228, 7
        %s231 = smul.addr %s230, 8
        %s232 = scalar_lea.vmem %s4, %s231
        %s233 = smul.u32 8, %s22
      $region24: #{cross_frame_attention.2} parent=11 // pred_fallthru
        _
    $region12: #{cross_frame_attention.2} parent=5 // pred_fallthru
      _
    %p234 = scmp.lt.s32.totalorder %s11, 2
    // Predicated region
    $region25: #{cross_frame_attention.2} parent=5 // pred_check
      %p235 = pneg %p234
    $region26: #{cross_frame_attention.2} parent=5 // pred_check_branch
      %237 = sbr.rel (%p235) target = $region28
    $region27: #{cross_frame_attention.2} parent=5 // pred_region
      // Predicated region
      $region29: #{cross_frame_attention.2} parent=27 // pred_check
        %p238 = pneg %p52
      $region30: #{cross_frame_attention.2} parent=27 // pred_check_branch
        %240 = sbr.rel (%p238) target = $region32
      $region31: #{cross_frame_attention.2} parent=27 // pred_region
        %s241 = smul.u32 2, %s20
        %p242 = scmp.lt.s32.totalorder %s18, 1
        %s243 = scalar_select %p242, %s18, 1
        %p244 = scmp.lt.s32.totalorder %s241, 1
        %s245 = scalar_select %p244, %s241, 1
        %s246 = smul.addr %s243, 2
        %s247 = sadd.s32 %s245, %s246
        %s248 = smul.addr %s247, 8
        %s249 = scalar_lea.vmem %s0, %s248
        %s250 = smul.u32 2, %s20
      $region32: #{cross_frame_attention.2} parent=27 // pred_fallthru
        _
      // Predicated region
      $region33: #{cross_frame_attention.2} parent=27 // pred_check
        %p251 = pneg %p78
      $region34: #{cross_frame_attention.2} parent=27 // pred_check_branch
        %253 = sbr.rel (%p251) target = $region36
      $region35: #{cross_frame_attention.2} parent=27 // pred_region
        %p254 = scmp.lt.s32.totalorder %s18, 1
        %s255 = scalar_select %p254, %s18, 1
        %s256 = smul.addr %s255, 2
        %s257 = smul.addr %s256, 8
        %s258 = scalar_lea.vmem %s1, %s257
      $region36: #{cross_frame_attention.2} parent=27 // pred_fallthru
        _
    $region28: #{cross_frame_attention.2} parent=5 // pred_fallthru
      _
    %p259 = scmp.le.s32.totalorder 1, %s11
    %p260 = scmp.lt.s32.totalorder %s11, 3
    %p261 = pnand %p259, %p260
    %p262 = pneg %p261
    // Predicated region
    $region37: #{cross_frame_attention.2} parent=5 // pred_check
      _
    $region38: #{cross_frame_attention.2} parent=5 // pred_check_branch
      %264 = sbr.rel (%p261) target = $region40
    $region39: #{cross_frame_attention.2} parent=5 // pred_region
      %s265 = ssub.s32 %s11, 1
      %s266 = smul.u32 2, %s23
      %p267 = scmp.lt.s32.totalorder %s21, 1
      %s268 = scalar_select %p267, %s21, 1
      %p269 = scmp.lt.s32.totalorder %s266, 1
      %s270 = scalar_select %p269, %s266, 1
      %s271 = smul.addr %s268, 2
      %s272 = sadd.s32 %s270, %s271
      %s273 = smul.addr %s272, 8
      %s274 = scalar_lea.vmem %s0, %s273
      %p275 = pneg %p58
      %p276 = pneg %p55
      %p277 = scmp.lt.s32.totalorder %s21, 1
      %s278 = scalar_select %p277, %s21, 1
      %s279 = smul.addr %s278, 2
      %s280 = smul.addr %s279, 8
      %s281 = scalar_lea.vmem %s1, %s280
      %p282 = pneg %p84
      %p283 = pneg %p81
      %s284 = smul.u32 8, %s22
      %p285 = scmp.lt.s32.totalorder %s284, 7
      %s286 = scalar_select %p285, %s284, 7
      %s287 = smul.addr %s286, 8
      %s288 = scalar_lea.vmem %s2, %s287
      %p289 = pneg %p110
      %p290 = pneg %p107
      %s291 = smul.u32 8, %s22
      %p292 = scmp.lt.s32.totalorder %s291, 7
      %s293 = scalar_select %p292, %s291, 7
      %s294 = smul.addr %s293, 8
      %s295 = scalar_lea.vmem %s3, %s294
      %p296 = pneg %p136
      %p297 = pneg %p133
      %s298 = smul.u32 8, %s22
      %p299 = scmp.lt.s32.totalorder %s298, 7
      %s300 = scalar_select %p299, %s298, 7
      %s301 = smul.addr %s300, 8
      %s302 = scalar_lea.vmem %s4, %s301
      %p303 = pneg %p162
      %p304 = pneg %p159
      %p305 = pneg %p192
      %p306 = pneg %p189
      %s307 = smul.u32 2, %s23
      %p308 = scmp.lt.s32.totalorder %s21, 1
      %s309 = scalar_select %p308, %s21, 1
      %p310 = scmp.lt.s32.totalorder %s307, 1
      %s311 = scalar_select %p310, %s307, 1
      %p312 = scmp.lt.s32.totalorder %s22, 0
      %s313 = scalar_select %p312, %s22, 0
      %s314 = sadd.s32 %s313, %s311
      %s315 = smul.addr %s309, 2
      %s316 = sadd.s32 %s314, %s315
      %s317 = smul.addr %s316, 8
      %s318 = scalar_lea.vmem %s5, %s317
      %s319 = smul.u32 2, %s23
      %p320 = scmp.lt.s32.totalorder %s21, 1
      %s321 = scalar_select %p320, %s21, 1
      %p322 = scmp.lt.s32.totalorder %s319, 1
      %s323 = scalar_select %p322, %s319, 1
      %s324 = smul.addr %s321, 2
      %s325 = sadd.s32 %s323, %s324
      %s326 = smul.addr %s325, 8
      %s327 = scalar_lea.vmem %s0, %s326
      %s328 = smul.u32 2, %s23
      %p329 = scmp.lt.s32.totalorder %s21, 1
      %s330 = scalar_select %p329, %s21, 1
      %s331 = smul.addr %s330, 2
      %s332 = smul.addr %s331, 8
      %s333 = scalar_lea.vmem %s1, %s332
      %s334 = smul.u32 8, %s22
      %p335 = scmp.lt.s32.totalorder %s334, 7
      %s336 = scalar_select %p335, %s334, 7
      %s337 = smul.addr %s336, 8
      %s338 = scalar_lea.vmem %s2, %s337
      %s339 = smul.u32 8, %s22
      %s340 = smul.u32 8, %s22
      %p341 = scmp.lt.s32.totalorder %s340, 7
      %s342 = scalar_select %p341, %s340, 7
      %s343 = smul.addr %s342, 8
      %s344 = scalar_lea.vmem %s3, %s343
      %s345 = smul.u32 8, %s22
      %s346 = smul.u32 8, %s22
      %p347 = scmp.lt.s32.totalorder %s346, 7
      %s348 = scalar_select %p347, %s346, 7
      %s349 = smul.addr %s348, 8
      %s350 = scalar_lea.vmem %s4, %s349
      %s351 = smul.u32 8, %s22
      %s352 = smul.u32 2, %s23
      %p353 = scmp.lt.s32.totalorder %s21, 1
      %s354 = scalar_select %p353, %s21, 1
      %p355 = scmp.lt.s32.totalorder %s352, 1
      %s356 = scalar_select %p355, %s352, 1
      %p357 = scmp.lt.s32.totalorder %s22, 0
      %s358 = scalar_select %p357, %s22, 0
      %s359 = sadd.s32 %s358, %s356
      %s360 = smul.addr %s354, 2
      %s361 = sadd.s32 %s359, %s360
      %s362 = smul.addr %s361, 8
      %s363 = scalar_lea.vmem %s5, %s362
      %s364 = smul.u32 2, %s23
      %p365 = scmp.eq.s32.totalorder %s23, 0
      // Predicated region
      $region41: #{cross_frame_attention.2} parent=39 // pred_check
        %p366 = pneg %p365
      $region42: #{cross_frame_attention.2} parent=39 // pred_check_branch
        %368 = sbr.rel (%p366) target = $region44
      $region43: #{cross_frame_attention.2} parent=39 // pred_region
        %v369 = vld [vmem:[%s333] sm:$0xff]
        %v370 = vld [vmem:[%s333 + $0x8] sm:$0xff]
        %v371 = vld [vmem:[%s344] sm:$0xff]
        %v372 = vld [vmem:[%s344 + $0x8] sm:$0xff]
        %v373 = vld [vmem:[%s344 + $0x10] sm:$0xff]
        %v374 = vld [vmem:[%s344 + $0x18] sm:$0xff]
        %v375 = vld [vmem:[%s344 + $0x20] sm:$0xff]
        %v376 = vld [vmem:[%s344 + $0x28] sm:$0xff]
        %v377 = vld [vmem:[%s344 + $0x30] sm:$0xff]
        %v378 = vld [vmem:[%s344 + $0x38] sm:$0xff]
        %vm379 = vcmask 261120
        %v381 = vsel %vm379, %v369, 0
        %v384 = vsel %vm379, %v370, 0
        %v387 = vsel %vm379, %v371, 0
        %v390 = vsel %vm379, %v372, 0
        %v393 = vsel %vm379, %v373, 0
        %v396 = vsel %vm379, %v374, 0
        %v399 = vsel %vm379, %v375, 0
        %v402 = vsel %vm379, %v376, 0
        %v405 = vsel %vm379, %v377, 0
        %v408 = vsel %vm379, %v378, 0
        %410 = vmatpush.xpose.msra.mxu0 0.0
        %411 = vmatpush.xpose.msra.mxu0 0.0
        %412 = vmatpush.xpose.msra.mxu0 0.0
        %413 = vmatpush.xpose.msra.mxu0 0.0
        %414 = vmatpush.xpose.msra.mxu0 0.0
        %415 = vmatpush.xpose.msra.mxu0 0.0
        %416 = vmatpush.xpose.msra.mxu0 0.0
        %417 = vmatpush.xpose.msra.mxu0 0.0
        %418 = vmatpush.xpose.msra.mxu0 %v408
        %419 = vmatpush.xpose.msra.mxu0 %v405
        %420 = vmatpush.xpose.msra.mxu0 %v402
        %421 = vmatpush.xpose.msra.mxu0 %v399
        %422 = vmatpush.xpose.msra.mxu0 %v396
        %423 = vmatpush.xpose.msra.mxu0 %v393
        %424 = vmatpush.xpose.msra.mxu0 %v390
        %425 = vmatpush.xpose.msra.mxu0 %v387
        %426 = vmatmul.f32.gmra.mxu0 %v381
        %v427 = vpop.f32.mrf.mxu0
        %v428 = vadd.f32 0.0, %v427
        %429 = vmatmul.f32.gmra.mxu0 %v384
        %v430 = vpop.f32.mrf.mxu0
        %v431 = vadd.f32 0.0, %v430
        %432 = vdwg.mxu0
        %v433 = vld [vmem:[%s350] sm:$0xff]
        %v434 = vld [vmem:[%s350 + $0x8] sm:$0xff]
        %v435 = vld [vmem:[%s350 + $0x10] sm:$0xff]
        %v436 = vld [vmem:[%s350 + $0x18] sm:$0xff]
        %v437 = vld [vmem:[%s350 + $0x20] sm:$0xff]
        %v438 = vld [vmem:[%s350 + $0x28] sm:$0xff]
        %v439 = vld [vmem:[%s350 + $0x30] sm:$0xff]
        %v440 = vld [vmem:[%s350 + $0x38] sm:$0xff]
        %v442 = vsel %vm379, %v433, 0
        %v445 = vsel %vm379, %v434, 0
        %v448 = vsel %vm379, %v435, 0
        %v451 = vsel %vm379, %v436, 0
        %v454 = vsel %vm379, %v437, 0
        %v457 = vsel %vm379, %v438, 0
        %v460 = vsel %vm379, %v439, 0
        %v463 = vsel %vm379, %v440, 0
        %465 = vmatpush.xpose.msra.mxu0 0.0
        %466 = vmatpush.xpose.msra.mxu0 0.0
        %467 = vmatpush.xpose.msra.mxu0 0.0
        %468 = vmatpush.xpose.msra.mxu0 0.0
        %469 = vmatpush.xpose.msra.mxu0 0.0
        %470 = vmatpush.xpose.msra.mxu0 0.0
        %471 = vmatpush.xpose.msra.mxu0 0.0
        %472 = vmatpush.xpose.msra.mxu0 0.0
        %473 = vmatpush.xpose.msra.mxu0 %v463
        %474 = vmatpush.xpose.msra.mxu0 %v460
        %475 = vmatpush.xpose.msra.mxu0 %v457
        %476 = vmatpush.xpose.msra.mxu0 %v454
        %477 = vmatpush.xpose.msra.mxu0 %v451
        %478 = vmatpush.xpose.msra.mxu0 %v448
        %479 = vmatpush.xpose.msra.mxu0 %v445
        %480 = vmatpush.xpose.msra.mxu0 %v442
        %481 = vmatmul.f32.gmra.mxu0 %v381
        %v482 = vpop.f32.mrf.mxu0
        %v483 = vadd.f32 0.0, %v482
        %484 = vmatmul.f32.gmra.mxu0 %v384
        %v485 = vpop.f32.mrf.mxu0
        %v486 = vadd.f32 0.0, %v485
        %487 = vdwg.mxu0
        %vm488 = vcmask 523264
        %489 = vst.msk [vmem:[#allocation2] sm:$0xff] %vm488, %v428
        %490 = vst.msk [vmem:[#allocation2 + $0x8] sm:$0xff] %vm488, %v431
        %491 = vst.msk [vmem:[#allocation3] sm:$0xff] %vm488, %v483
        %492 = vst.msk [vmem:[#allocation3 + $0x8] sm:$0xff] %vm488, %v486
      $region44: #{cross_frame_attention.2} parent=39 // pred_fallthru
        _
      %v493 = vld [vmem:[%s327] sm:$0xff]
      %v494 = vld [vmem:[%s327 + $0x8] sm:$0xff]
      %v495 = vld [vmem:[%s338] sm:$0xff]
      %v496 = vld [vmem:[%s338 + $0x8] sm:$0xff]
      %v497 = vld [vmem:[%s338 + $0x10] sm:$0xff]
      %v498 = vld [vmem:[%s338 + $0x18] sm:$0xff]
      %v499 = vld [vmem:[%s338 + $0x20] sm:$0xff]
      %v500 = vld [vmem:[%s338 + $0x28] sm:$0xff]
      %v501 = vld [vmem:[%s338 + $0x30] sm:$0xff]
      %v502 = vld [vmem:[%s338 + $0x38] sm:$0xff]
      %vm503 = vcmask 261120
      %v505 = vsel %vm503, %v493, 0
      %v508 = vsel %vm503, %v494, 0
      %v511 = vsel %vm503, %v495, 0
      %v514 = vsel %vm503, %v496, 0
      %v517 = vsel %vm503, %v497, 0
      %v520 = vsel %vm503, %v498, 0
      %v523 = vsel %vm503, %v499, 0
      %v526 = vsel %vm503, %v500, 0
      %v529 = vsel %vm503, %v501, 0
      %v532 = vsel %vm503, %v502, 0
      %534 = vmatpush.xpose.msra.mxu0 0.0
      %535 = vmatpush.xpose.msra.mxu0 0.0
      %536 = vmatpush.xpose.msra.mxu0 0.0
      %537 = vmatpush.xpose.msra.mxu0 0.0
      %538 = vmatpush.xpose.msra.mxu0 0.0
      %539 = vmatpush.xpose.msra.mxu0 0.0
      %540 = vmatpush.xpose.msra.mxu0 0.0
      %541 = vmatpush.xpose.msra.mxu0 0.0
      %542 = vmatpush.xpose.msra.mxu0 %v532
      %543 = vmatpush.xpose.msra.mxu0 %v529
      %544 = vmatpush.xpose.msra.mxu0 %v526
      %545 = vmatpush.xpose.msra.mxu0 %v523
      %546 = vmatpush.xpose.msra.mxu0 %v520
      %547 = vmatpush.xpose.msra.mxu0 %v517
      %548 = vmatpush.xpose.msra.mxu0 %v514
      %549 = vmatpush.xpose.msra.mxu0 %v511
      %550 = vmatmul.f32.gmra.mxu0 %v505
      %v551 = vpop.f32.mrf.mxu0
      %v552 = vadd.f32 0.0, %v551
      %553 = vmatmul.f32.gmra.mxu0 %v508
      %v554 = vpop.f32.mrf.mxu0
      %v555 = vadd.f32 0.0, %v554
      %556 = vdwg.mxu0
      %v557 = vmul.f32 %v552, 0.25
      %v558 = vmul.f32 %v555, 0.25
      %v559 = vld [vmem:[#allocation2] sm:$0xff]
      %v560 = vld [vmem:[#allocation2 + $0x8] sm:$0xff]
      %v561 = vld [vmem:[#allocation3] sm:$0xff]
      %v562 = vld [vmem:[#allocation3 + $0x8] sm:$0xff]
      %vm563 = vcmask 130048
      %v565 = vsel %vm563, %v557, 0
      %v568 = vsel %vm563, %v558, 0
      %v571 = vsel %vm563, %v559, 0
      %v574 = vsel %vm563, %v560, 0
      %576 = vmatpush.xpose.msra.mxu0 0.0
      %577 = vmatpush.xpose.msra.mxu0 0.0
      %578 = vmatpush.xpose.msra.mxu0 0.0
      %579 = vmatpush.xpose.msra.mxu0 0.0
      %580 = vmatpush.xpose.msra.mxu0 0.0
      %581 = vmatpush.xpose.msra.mxu0 0.0
      %582 = vmatpush.xpose.msra.mxu0 0.0
      %583 = vmatpush.xpose.msra.mxu0 0.0
      %584 = vmatpush.xpose.msra.mxu0 0.0
      %585 = vmatpush.xpose.msra.mxu0 0.0
      %586 = vmatpush.xpose.msra.mxu0 0.0
      %587 = vmatpush.xpose.msra.mxu0 0.0
      %588 = vmatpush.xpose.msra.mxu0 0.0
      %589 = vmatpush.xpose.msra.mxu0 0.0
      %590 = vmatpush.xpose.msra.mxu0 %v574
      %591 = vmatpush.xpose.msra.mxu0 %v571
      %592 = vmatmul.f32.gmra.mxu0 %v565
      %v593 = vpop.f32.mrf.mxu0
      %v594 = vadd.f32 0.0, %v593
      %595 = vmatmul.f32.gmra.mxu0 %v568
      %v596 = vpop.f32.mrf.mxu0
      %v597 = vadd.f32 0.0, %v596
      %598 = vdwg.mxu0
      %v599 = vsel %vm563, %v594, -inf
      %600 = vmax.xlane.f32.xlu0 %v599
      %v601 = vpop.xlane.xlu0 %600
      %v602 = vsel %vm563, %v597, -inf
      %603 = vmax.xlane.f32.xlu0 %v602
      %v604 = vpop.xlane.xlu0 %603
      %v605 = vsub.f32 %v594, %v601
      %v606 = vsub.f32 %v597, %v604
      %v607 = vmul.f32 %v605, 1.442695
      %v608 = vpow.pop %v607
      %v609 = vmul.f32 %v606, 1.442695
      %v610 = vpow.pop %v609
      %v611 = vsel %vm563, %v608, 0.0
      %612 = vadd.xlane.f32.xlu0 %v611
      %v613 = vpop.xlane.xlu0 %612
      %v614 = vsel %vm563, %v610, 0.0
      %615 = vadd.xlane.f32.xlu0 %v614
      %v616 = vpop.xlane.xlu0 %615
      %v617 = vrcp.pop %v613
      %v618 = vrcp.pop %v616
      %v619 = vmul.f32 %v608, %v617
      %v620 = vmul.f32 %v610, %v618
      %v622 = vsel %vm563, %v619, 0
      %v625 = vsel %vm563, %v620, 0
      %627 = vmatpush.msra.mxu0 0.0
      %628 = vmatpush.msra.mxu0 0.0
      %629 = vmatpush.msra.mxu0 0.0
      %630 = vmatpush.msra.mxu0 0.0
      %631 = vmatpush.msra.mxu0 0.0
      %632 = vmatpush.msra.mxu0 0.0
      %633 = vmatpush.msra.mxu0 0.0
      %634 = vmatpush.msra.mxu0 0.0
      %635 = vmatpush.msra.mxu0 0.0
      %636 = vmatpush.msra.mxu0 0.0
      %637 = vmatpush.msra.mxu0 0.0
      %638 = vmatpush.msra.mxu0 0.0
      %639 = vmatpush.msra.mxu0 0.0
      %640 = vmatpush.msra.mxu0 0.0
      %641 = vmatpush.msra.mxu0 %v562
      %642 = vmatpush.msra.mxu0 %v561
      %643 = vmatmul.f32.gmra.mxu0 %v622
      %v644 = vpop.f32.mrf.mxu0
      %v645 = vadd.f32 0.0, %v644
      %646 = vmatmul.f32.gmra.mxu0 %v625
      %v647 = vpop.f32.mrf.mxu0
      %v648 = vadd.f32 0.0, %v647
      %649 = vdwg.mxu0
      %650 = vrot.lane.b32.xlu0 %v557, 112
      %v651 = vpop.permute.xlu0 %650
      %652 = vrot.lane.b32.xlu0 %v558, 112
      %v653 = vpop.permute.xlu0 %652
      %654 = vrot.lane.b32.xlu0 %v559, 112
      %v655 = vpop.permute.xlu0 %654
      %656 = vrot.lane.b32.xlu0 %v560, 112
      %v657 = vpop.permute.xlu0 %656
      %v658 = vsel %vm563, %v651, 0
      %v660 = vsel %vm563, %v653, 0
      %v662 = vsel %vm563, %v655, 0
      %v664 = vsel %vm563, %v657, 0
      %666 = vmatpush.xpose.msra.mxu0 0.0
      %667 = vmatpush.xpose.msra.mxu0 0.0
      %668 = vmatpush.xpose.msra.mxu0 0.0
      %669 = vmatpush.xpose.msra.mxu0 0.0
      %670 = vmatpush.xpose.msra.mxu0 0.0
      %671 = vmatpush.xpose.msra.mxu0 0.0
      %672 = vmatpush.xpose.msra.mxu0 0.0
      %673 = vmatpush.xpose.msra.mxu0 0.0
      %674 = vmatpush.xpose.msra.mxu0 0.0
      %675 = vmatpush.xpose.msra.mxu0 0.0
      %676 = vmatpush.xpose.msra.mxu0 0.0
      %677 = vmatpush.xpose.msra.mxu0 0.0
      %678 = vmatpush.xpose.msra.mxu0 0.0
      %679 = vmatpush.xpose.msra.mxu0 0.0
      %680 = vmatpush.xpose.msra.mxu0 %v664
      %681 = vmatpush.xpose.msra.mxu0 %v662
      %682 = vmatmul.f32.gmra.mxu0 %v658
      %v683 = vpop.f32.mrf.mxu0
      %v684 = vadd.f32 0.0, %v683
      %685 = vmatmul.f32.gmra.mxu0 %v660
      %v686 = vpop.f32.mrf.mxu0
      %v687 = vadd.f32 0.0, %v686
      %688 = vdwg.mxu0
      %v689 = vsel %vm563, %v684, -inf
      %690 = vmax.xlane.f32.xlu0 %v689
      %v691 = vpop.xlane.xlu0 %690
      %v692 = vsel %vm563, %v687, -inf
      %693 = vmax.xlane.f32.xlu0 %v692
      %v694 = vpop.xlane.xlu0 %693
      %v695 = vsub.f32 %v684, %v691
      %v696 = vsub.f32 %v687, %v694
      %v697 = vmul.f32 %v695, 1.442695
      %v698 = vpow.pop %v697
      %v699 = vmul.f32 %v696, 1.442695
      %v700 = vpow.pop %v699
      %v701 = vsel %vm563, %v698, 0.0
      %702 = vadd.xlane.f32.xlu0 %v701
      %v703 = vpop.xlane.xlu0 %702
      %v704 = vsel %vm563, %v700, 0.0
      %705 = vadd.xlane.f32.xlu0 %v704
      %v706 = vpop.xlane.xlu0 %705
      %v707 = vrcp.pop %v703
      %v708 = vrcp.pop %v706
      %v709 = vmul.f32 %v698, %v707
      %v710 = vmul.f32 %v700, %v708
      %713 = vrot.lane.b32.xlu0 %v561, 112
      %v714 = vpop.permute.xlu0 %713
      %715 = vrot.lane.b32.xlu0 %v562, 112
      %v716 = vpop.permute.xlu0 %715
      %v720 = vsel %vm563, %v709, 0
      %v723 = vsel %vm563, %v710, 0
      %725 = vmatpush.msra.mxu0 0.0
      %726 = vmatpush.msra.mxu0 0.0
      %727 = vmatpush.msra.mxu0 0.0
      %728 = vmatpush.msra.mxu0 0.0
      %729 = vmatpush.msra.mxu0 0.0
      %730 = vmatpush.msra.mxu0 0.0
      %731 = vmatpush.msra.mxu0 0.0
      %732 = vmatpush.msra.mxu0 0.0
      %733 = vmatpush.msra.mxu0 0.0
      %734 = vmatpush.msra.mxu0 0.0
      %735 = vmatpush.msra.mxu0 0.0
      %736 = vmatpush.msra.mxu0 0.0
      %737 = vmatpush.msra.mxu0 0.0
      %738 = vmatpush.msra.mxu0 0.0
      %739 = vmatpush.msra.mxu0 %v716
      %740 = vmatpush.msra.mxu0 %v714
      %741 = vmatmul.f32.gmra.mxu0 %v720
      %v742 = vpop.f32.mrf.mxu0
      %v743 = vadd.f32 0.0, %v742
      %744 = vmatmul.f32.gmra.mxu0 %v723
      %v745 = vpop.f32.mrf.mxu0
      %v746 = vadd.f32 0.0, %v745
      %747 = vdwg.mxu0
      %748 = vrot.lane.b32.xlu0 %v557, 96
      %v749 = vpop.permute.xlu0 %748
      %750 = vrot.lane.b32.xlu0 %v558, 96
      %v751 = vpop.permute.xlu0 %750
      %752 = vrot.lane.b32.xlu0 %v559, 96
      %v753 = vpop.permute.xlu0 %752
      %754 = vrot.lane.b32.xlu0 %v560, 96
      %v755 = vpop.permute.xlu0 %754
      %v756 = vsel %vm563, %v749, 0
      %v758 = vsel %vm563, %v751, 0
      %v760 = vsel %vm563, %v753, 0
      %v762 = vsel %vm563, %v755, 0
      %764 = vmatpush.xpose.msra.mxu0 0.0
      %765 = vmatpush.xpose.msra.mxu0 0.0
      %766 = vmatpush.xpose.msra.mxu0 0.0
      %767 = vmatpush.xpose.msra.mxu0 0.0
      %768 = vmatpush.xpose.msra.mxu0 0.0
      %769 = vmatpush.xpose.msra.mxu0 0.0
      %770 = vmatpush.xpose.msra.mxu0 0.0
      %771 = vmatpush.xpose.msra.mxu0 0.0
      %772 = vmatpush.xpose.msra.mxu0 0.0
      %773 = vmatpush.xpose.msra.mxu0 0.0
      %774 = vmatpush.xpose.msra.mxu0 0.0
      %775 = vmatpush.xpose.msra.mxu0 0.0
      %776 = vmatpush.xpose.msra.mxu0 0.0
      %777 = vmatpush.xpose.msra.mxu0 0.0
      %778 = vmatpush.xpose.msra.mxu0 %v762
      %779 = vmatpush.xpose.msra.mxu0 %v760
      %780 = vmatmul.f32.gmra.mxu0 %v756
      %v781 = vpop.f32.mrf.mxu0
      %v782 = vadd.f32 0.0, %v781
      %783 = vmatmul.f32.gmra.mxu0 %v758
      %v784 = vpop.f32.mrf.mxu0
      %v785 = vadd.f32 0.0, %v784
      %786 = vdwg.mxu0
      %v787 = vsel %vm563, %v782, -inf
      %788 = vmax.xlane.f32.xlu0 %v787
      %v789 = vpop.xlane.xlu0 %788
      %v790 = vsel %vm563, %v785, -inf
      %791 = vmax.xlane.f32.xlu0 %v790
      %v792 = vpop.xlane.xlu0 %791
      %v793 = vsub.f32 %v782, %v789
      %v794 = vsub.f32 %v785, %v792
      %v795 = vmul.f32 %v793, 1.442695
      %v796 = vpow.pop %v795
      %v797 = vmul.f32 %v794, 1.442695
      %v798 = vpow.pop %v797
      %v799 = vsel %vm563, %v796, 0.0
      %800 = vadd.xlane.f32.xlu0 %v799
      %v801 = vpop.xlane.xlu0 %800
      %v802 = vsel %vm563, %v798, 0.0
      %803 = vadd.xlane.f32.xlu0 %v802
      %v804 = vpop.xlane.xlu0 %803
      %v805 = vrcp.pop %v801
      %v806 = vrcp.pop %v804
      %v807 = vmul.f32 %v796, %v805
      %v808 = vmul.f32 %v798, %v806
      %809 = vrot.lane.b32.xlu0 %v561, 96
      %v810 = vpop.permute.xlu0 %809
      %811 = vrot.lane.b32.xlu0 %v562, 96
      %v812 = vpop.permute.xlu0 %811
      %v816 = vsel %vm563, %v807, 0
      %v819 = vsel %vm563, %v808, 0
      %821 = vmatpush.msra.mxu0 0.0
      %822 = vmatpush.msra.mxu0 0.0
      %823 = vmatpush.msra.mxu0 0.0
      %824 = vmatpush.msra.mxu0 0.0
      %825 = vmatpush.msra.mxu0 0.0
      %826 = vmatpush.msra.mxu0 0.0
      %827 = vmatpush.msra.mxu0 0.0
      %828 = vmatpush.msra.mxu0 0.0
      %829 = vmatpush.msra.mxu0 0.0
      %830 = vmatpush.msra.mxu0 0.0
      %831 = vmatpush.msra.mxu0 0.0
      %832 = vmatpush.msra.mxu0 0.0
      %833 = vmatpush.msra.mxu0 0.0
      %834 = vmatpush.msra.mxu0 0.0
      %835 = vmatpush.msra.mxu0 %v812
      %836 = vmatpush.msra.mxu0 %v810
      %837 = vmatmul.f32.gmra.mxu0 %v816
      %v838 = vpop.f32.mrf.mxu0
      %v839 = vadd.f32 0.0, %v838
      %840 = vmatmul.f32.gmra.mxu0 %v819
      %v841 = vpop.f32.mrf.mxu0
      %v842 = vadd.f32 0.0, %v841
      %843 = vdwg.mxu0
      %844 = vrot.lane.b32.xlu0 %v557, 80
      %v845 = vpop.permute.xlu0 %844
      %846 = vrot.lane.b32.xlu0 %v558, 80
      %v847 = vpop.permute.xlu0 %846
      %848 = vrot.lane.b32.xlu0 %v559, 80
      %v849 = vpop.permute.xlu0 %848
      %850 = vrot.lane.b32.xlu0 %v560, 80
      %v851 = vpop.permute.xlu0 %850
      %v852 = vsel %vm563, %v845, 0
      %v854 = vsel %vm563, %v847, 0
      %v856 = vsel %vm563, %v849, 0
      %v858 = vsel %vm563, %v851, 0
      %860 = vmatpush.xpose.msra.mxu0 0.0
      %861 = vmatpush.xpose.msra.mxu0 0.0
      %862 = vmatpush.xpose.msra.mxu0 0.0
      %863 = vmatpush.xpose.msra.mxu0 0.0
      %864 = vmatpush.xpose.msra.mxu0 0.0
      %865 = vmatpush.xpose.msra.mxu0 0.0
      %866 = vmatpush.xpose.msra.mxu0 0.0
      %867 = vmatpush.xpose.msra.mxu0 0.0
      %868 = vmatpush.xpose.msra.mxu0 0.0
      %869 = vmatpush.xpose.msra.mxu0 0.0
      %870 = vmatpush.xpose.msra.mxu0 0.0
      %871 = vmatpush.xpose.msra.mxu0 0.0
      %872 = vmatpush.xpose.msra.mxu0 0.0
      %873 = vmatpush.xpose.msra.mxu0 0.0
      %874 = vmatpush.xpose.msra.mxu0 %v858
      %875 = vmatpush.xpose.msra.mxu0 %v856
      %876 = vmatmul.f32.gmra.mxu0 %v852
      %v877 = vpop.f32.mrf.mxu0
      %v878 = vadd.f32 0.0, %v877
      %879 = vmatmul.f32.gmra.mxu0 %v854
      %v880 = vpop.f32.mrf.mxu0
      %v881 = vadd.f32 0.0, %v880
      %882 = vdwg.mxu0
      %v883 = vsel %vm563, %v878, -inf
      %884 = vmax.xlane.f32.xlu0 %v883
      %v885 = vpop.xlane.xlu0 %884
      %v886 = vsel %vm563, %v881, -inf
      %887 = vmax.xlane.f32.xlu0 %v886
      %v888 = vpop.xlane.xlu0 %887
      %v889 = vsub.f32 %v878, %v885
      %v890 = vsub.f32 %v881, %v888
      %v891 = vmul.f32 %v889, 1.442695
      %v892 = vpow.pop %v891
      %v893 = vmul.f32 %v890, 1.442695
      %v894 = vpow.pop %v893
      %v895 = vsel %vm563, %v892, 0.0
      %896 = vadd.xlane.f32.xlu0 %v895
      %v897 = vpop.xlane.xlu0 %896
      %v898 = vsel %vm563, %v894, 0.0
      %899 = vadd.xlane.f32.xlu0 %v898
      %v900 = vpop.xlane.xlu0 %899
      %v901 = vrcp.pop %v897
      %v902 = vrcp.pop %v900
      %v903 = vmul.f32 %v892, %v901
      %v904 = vmul.f32 %v894, %v902
      %905 = vrot.lane.b32.xlu0 %v561, 80
      %v906 = vpop.permute.xlu0 %905
      %907 = vrot.lane.b32.xlu0 %v562, 80
      %v908 = vpop.permute.xlu0 %907
      %v912 = vsel %vm563, %v903, 0
      %v915 = vsel %vm563, %v904, 0
      %917 = vmatpush.msra.mxu0 0.0
      %918 = vmatpush.msra.mxu0 0.0
      %919 = vmatpush.msra.mxu0 0.0
      %920 = vmatpush.msra.mxu0 0.0
      %921 = vmatpush.msra.mxu0 0.0
      %922 = vmatpush.msra.mxu0 0.0
      %923 = vmatpush.msra.mxu0 0.0
      %924 = vmatpush.msra.mxu0 0.0
      %925 = vmatpush.msra.mxu0 0.0
      %926 = vmatpush.msra.mxu0 0.0
      %927 = vmatpush.msra.mxu0 0.0
      %928 = vmatpush.msra.mxu0 0.0
      %929 = vmatpush.msra.mxu0 0.0
      %930 = vmatpush.msra.mxu0 0.0
      %931 = vmatpush.msra.mxu0 %v908
      %932 = vmatpush.msra.mxu0 %v906
      %933 = vmatmul.f32.gmra.mxu0 %v912
      %v934 = vpop.f32.mrf.mxu0
      %v935 = vadd.f32 0.0, %v934
      %936 = vmatmul.f32.gmra.mxu0 %v915
      %v937 = vpop.f32.mrf.mxu0
      %v938 = vadd.f32 0.0, %v937
      %939 = vdwg.mxu0
      %942 = vrot.lane.b32.xlu0 %v743, 16
      %v943 = vpop.permute.xlu0 %942
      %944 = vrot.lane.b32.xlu0 %v746, 16
      %v945 = vpop.permute.xlu0 %944
      %950 = vrot.lane.b32.xlu0 %v839, 32
      %v951 = vpop.permute.xlu0 %950
      %952 = vrot.lane.b32.xlu0 %v842, 32
      %v953 = vpop.permute.xlu0 %952
      %958 = vrot.lane.b32.xlu0 %v935, 48
      %v959 = vpop.permute.xlu0 %958
      %960 = vrot.lane.b32.xlu0 %v938, 48
      %v961 = vpop.permute.xlu0 %960
      %v964 = vsel %vm563, %v645, %v943
      %v965 = vsel %vm563, %v648, %v945
      %v966 = vsel %vm503, %v964, %v951
      %v967 = vsel %vm503, %v965, %v953
      %vm968 = vcmask 392192
      %v969 = vsel %vm968, %v966, %v959
      %v970 = vsel %vm968, %v967, %v961
      %vm971 = vcmask 523264
      %972 = vst.msk [vmem:[%s363] sm:$0xff] %vm971, %v969
      %973 = vst.msk [vmem:[%s363 + $0x8] sm:$0xff] %vm971, %v970
      %s974 = smul.u32 2, %s23
      %p975 = scmp.lt.s32.totalorder %s21, 1
      %s976 = scalar_select %p975, %s21, 1
      %p977 = scmp.lt.s32.totalorder %s974, 1
      %s978 = scalar_select %p977, %s974, 1
      %p979 = scmp.lt.s32.totalorder %s22, 0
      %s980 = scalar_select %p979, %s22, 0
      %s981 = sadd.s32 %s980, %s978
      %s982 = smul.addr %s976, 2
      %s983 = sadd.s32 %s981, %s982
      %s984 = smul.addr %s983, 8
      %s985 = scalar_lea.vmem %s5, %s984
      // Predicated region
      $region45: #{cross_frame_attention.2} parent=39 // pred_check
        %p986 = pneg %p189
      $region46: #{cross_frame_attention.2} parent=39 // pred_check_branch
        %988 = sbr.rel (%p986) target = $region48
      $region47: #{cross_frame_attention.2} parent=39 // pred_region
        %s989 = smul.u32 2, %s23
      $region48: #{cross_frame_attention.2} parent=39 // pred_fallthru
        _
    $region40: #{cross_frame_attention.2} parent=5 // pred_fallthru
      _
    %p990 = scmp.le.s32.totalorder 2, %s11
    // Predicated region
    $region49: #{cross_frame_attention.2} parent=5 // pred_check
      %p991 = pneg %p990
    $region50: #{cross_frame_attention.2} parent=5 // pred_check_branch
      %993 = sbr.rel (%p991) target = $region52
    $region51: #{cross_frame_attention.2} parent=5 // pred_region
      %s994 = ssub.s32 %s11, 2
      // Predicated region
      $region53: #{cross_frame_attention.2} parent=51 // pred_check
        %p995 = pneg %p195
      $region54: #{cross_frame_attention.2} parent=51 // pred_check_branch
        %997 = sbr.rel (%p995) target = $region56
      $region55: #{cross_frame_attention.2} parent=51 // pred_region
        %s998 = smul.u32 2, %s26
        %p999 = scmp.lt.s32.totalorder %s24, 1
        %s1000 = scalar_select %p999, %s24, 1
        %p1001 = scmp.lt.s32.totalorder %s998, 1
        %s1002 = scalar_select %p1001, %s998, 1
        %p1003 = scmp.lt.s32.totalorder %s25, 0
        %s1004 = scalar_select %p1003, %s25, 0
        %s1005 = sadd.s32 %s1004, %s1002
        %s1006 = smul.addr %s1000, 2
        %s1007 = sadd.s32 %s1005, %s1006
        %s1008 = smul.addr %s1007, 8
        %s1009 = scalar_lea.vmem %s5, %s1008
      $region56: #{cross_frame_attention.2} parent=51 // pred_fallthru
        _
    $region52: #{cross_frame_attention.2} parent=5 // pred_fallthru
      _
  $region6: #{cross_frame_attention.2} parent=0 // loop_footer
    %s15 = sadd.s32 1, %s11
  $region7: #{cross_frame_attention.2} parent=0 // loop_footer_branch
    %10 = sbr.rel target = $region3
  $region8: #{cross_frame_attention.2} parent=0 // loop_exit
    _

</llo_original>
